<compile_context>
chip_gen: v5e
topology: v5e:2x2
jax: 0.10.0
libtpu: 0.0.40
codegen_flags: <defaults>
</compile_context>

<pallas_src>
import math

import jax
import jax.numpy as jnp
from jax.experimental import pallas as pl
from jax.experimental.pallas import tpu as pltpu


LANE = 128        # vreg lane width
SUBLANE = 8       # f32 sublane width

MAX_TILE_B = 256  # batch-tile cap
MAX_TILE_K = 1024 # whole reduction kept in one tile up to this size
MAX_TILE_N = 512  # single output tile up to this width


def _round_up(x, m):
    return (x + m - 1) // m * m


def _cdiv(a, b):
    return (a + b - 1) // b


# ------------------------------ tiling plans --------------------------------

def _nk_plan(in_features, out_features):
    """Padded K/N extents and tile sizes (shared by init-time padding and the
    forward pass so they always agree)."""
    # N: lane-dense; one tile when small, otherwise 256/512-wide tiles
    # (multiples of 256 fill the v6e/v7x MXU).
    out_pad = _round_up(out_features, LANE)
    if out_pad <= MAX_TILE_N:
        tile_n = out_pad
    else:
        out_pad = _round_up(out_features, 256)
        tile_n = 512 if out_pad % 512 == 0 else 256
    # K: whole reduction in one tile when small, otherwise 256/512-deep tiles
    # accumulated in VMEM scratch.
    if in_features <= MAX_TILE_K:
        k_pad, tile_k = in_features, in_features
    else:
        k_pad = _round_up(in_features, 256)
        tile_k = 512 if k_pad % 512 == 0 else 256
    return k_pad, tile_k, out_pad, tile_n


def _batch_plan(batch):
    """Batch tiling: waste bounded by the sublane (8) per tile, and >=2 tiles
    when batch >= 16 so v7x can use both TensorCores."""
    b_al = _round_up(batch, SUBLANE)
    nb = max(_cdiv(b_al, MAX_TILE_B), 2 if batch >= 16 else 1)
    tile_b = _round_up(_cdiv(b_al, nb), SUBLANE)
    nb = _cdiv(b_al, tile_b)
    return nb * tile_b, tile_b, nb


# ------------------------------ Pallas kernels ------------------------------

def _linear_kernel(x_ref, w_ref, b_ref, o_ref):
    # Whole reduction in one block: MXU matmul + bias, lane-dense store.
    y = jnp.dot(x_ref[...], w_ref[...], preferred_element_type=jnp.float32)
    o_ref[...] = (y + b_ref[...]).astype(o_ref.dtype)


def _linear_kernel_acc(x_ref, w_ref, b_ref, o_ref, acc_ref):
    # K is tiled: accumulate partial products in f32 VMEM scratch.
    k = pl.program_id(2)

    @pl.when(k == 0)
    def _():
        acc_ref[...] = jnp.zeros_like(acc_ref)

    acc_ref[...] += jnp.dot(x_ref[...], w_ref[...],
                            preferred_element_type=jnp.float32)

    @pl.when(k == pl.num_programs(2) - 1)
    def _():
        o_ref[...] = (acc_ref[...] + b_ref[...]).astype(o_ref.dtype)


# ------------------------------- forward pass -------------------------------

def linear_forward(x, w_p, b_p, out_features):
    """y = x @ w + b with a pre-padded (k_pad, out_pad) weight and (1, out_pad)
    bias (as produced by init_linear_model_params)."""
    batch, in_features = x.shape
    k_pad, tile_k, out_pad, tile_n = _nk_plan(in_features, out_features)
    assert w_p.shape == (k_pad, out_pad) and b_p.shape == (1, out_pad)

    batch_pad, tile_b, nb = _batch_plan(batch)
    nn = out_pad // tile_n
    nk = k_pad // tile_k

    # Only the activation ever needs call-time padding (bounded: <8 rows per
    # batch tile, and K padding only in the tiled-K case).
    if (batch_pad != batch) or (k_pad != in_features):
        x = jnp.pad(x, ((0, batch_pad - batch), (0, k_pad - in_features)))

    # Scheduling hint for XLA around the custom call.
    cost = pl.CostEstimate(
        flops=2 * batch_pad * k_pad * out_pad,
        transcendentals=0,
        bytes_accessed=4 * (batch_pad * k_pad + k_pad * out_pad + out_pad
                            + batch_pad * out_pad),
    )

    # Double-buffered VMEM working set; raise the scoped limit only if the tile
    # caps are ever enlarged enough to need it (kept < 48 MiB: safe on v7x's
    # 64 MiB physical VMEM and on v5e/v6e's 128 MiB).
    ws = 4 * (2 * tile_b * tile_k + 2 * tile_k * tile_n + 2 * tile_n
              + 2 * tile_b * tile_n + tile_b * tile_n)
    vmem_limit = None
    if ws > (12 << 20):
        vmem_limit = min(int(1.5 * ws) + (2 << 20), 48 << 20)

    if nk == 1:
        grid = (nb, nn)
        in_specs = [
            pl.BlockSpec((tile_b, tile_k), lambda i, j: (i, 0)),   # x tile
            pl.BlockSpec((tile_k, tile_n), lambda i, j: (0, j)),   # w tile
            pl.BlockSpec((1, tile_n), lambda i, j: (0, j)),        # bias tile
        ]
        out_specs = pl.BlockSpec((tile_b, tile_n), lambda i, j: (i, j))
        scratch_shapes = []
        kernel = _linear_kernel
        dims = ("parallel", "parallel")
    else:
        grid = (nb, nn, nk)
        in_specs = [
            pl.BlockSpec((tile_b, tile_k), lambda i, j, k: (i, k)),
            pl.BlockSpec((tile_k, tile_n), lambda i, j, k: (k, j)),
            pl.BlockSpec((1, tile_n), lambda i, j, k: (0, j)),
        ]
        out_specs = pl.BlockSpec((tile_b, tile_n), lambda i, j, k: (i, j))
        scratch_shapes = [pltpu.VMEM((tile_b, tile_n), jnp.float32)]
        kernel = _linear_kernel_acc
        dims = ("parallel", "parallel", "arbitrary")

    y_p = pl.pallas_call(
        kernel,
        out_shape=jax.ShapeDtypeStruct((batch_pad, out_pad), x.dtype),
        grid_spec=pltpu.PrefetchScalarGridSpec(
            num_scalar_prefetch=0,
            grid=grid,
            in_specs=in_specs,
            out_specs=out_specs,
            scratch_shapes=scratch_shapes,
        ),
        compiler_params=pltpu.CompilerParams(
            dimension_semantics=dims,
            vmem_limit_bytes=vmem_limit,
        ),
        cost_estimate=cost,
    )(x, w_p, b_p)

    if batch_pad != batch or out_pad != out_features:
        y_p = y_p[:batch, :out_features]
    return y_p


# --------------------------- parameter creation -----------------------------

def _xavier_uniform(key, fan_in, fan_out, dtype=jnp.float32):
    # Matches torch.nn.init.xavier_uniform_ (gain=1); stored transposed
    # (in_features, out_features) so the kernel computes x @ W on the MXU.
    bound = math.sqrt(6.0 / (fan_in + fan_out))
    return jax.random.uniform(key, (fan_in, fan_out), dtype=dtype,
                              minval=-bound, maxval=bound)


def init_linear_model_params(key, input_size, output_size):
    w = _xavier_uniform(key, input_size, output_size)
    b = jnp.full((1, output_size), 0.01, jnp.float32)
    # Pad ONCE here (not per forward call) to the kernel's lane-dense layout.
    k_pad, _, out_pad, _ = _nk_plan(input_size, output_size)
    w_p = jnp.pad(w, ((0, k_pad - input_size), (0, out_pad - output_size)))
    b_p = jnp.pad(b, ((0, 0), (0, out_pad - output_size)))
    return {
        "output_w": w_p,              # (k_pad, out_pad), zero-padded
        "output_b": b_p,              # (1, out_pad), zero-padded
        "in_features": input_size,
        "out_features": output_size,
    }


def linear_model_forward(params, x, *, force_pallas=False):
    """Replicates LinearModel.forward: x = self.output(x)."""
    out_features = params["out_features"]
    w_p, b_p = params["output_w"], params["output_b"]
    batch, in_features = x.shape
    # Tiny problems are pure dispatch/pipeline overhead in a custom kernel;
    # fall back to plain fused XLA there unless the Pallas path is forced.
    if (not force_pallas and batch * out_features <= 4096
            and in_features == w_p.shape[0]):
        return (x @ w_p + b_p)[:, :out_features]
    return linear_forward(x, w_p, b_p, out_features)


# ---------------------------------- main ------------------------------------

if __name__ == "__main__":
    def run_case(case_key, batch, input_size, output_size, atol, rtol):
        pkey, xkey = jax.random.split(case_key)
        params = init_linear_model_params(pkey, input_size, output_size)
        x = jax.random.normal(xkey, (batch, input_size), jnp.float32)

        y = linear_model_forward(params, x, force_pallas=True)  # exercise kernel
        jax.block_until_ready(y)

        assert y.shape == (batch, output_size)
        assert y.dtype == jnp.float32

        # Pure-JAX reference on the logical (unpadded) weights.
        w_log = params["output_w"][:input_size, :output_size]
        b_log = params["output_b"][:, :output_size]
        y_ref = x @ w_log + b_log
        assert jnp.allclose(y, y_ref, atol=atol, rtol=rtol), (
            batch, input_size, output_size)

    keys = jax.random.split(jax.random.PRNGKey(0), 3)

    # Actual LinearModel shapes: LinearModel(16, 4), batch of 8 state vectors.
    run_case(keys[0], batch=8, input_size=16, output_size=4,
             atol=1e-5, rtol=1e-5)
    # Batch-tiled path (>= 2 batch tiles, ragged batch padded to the sublane).
    run_case(keys[1], batch=40, input_size=384, output_size=96,
             atol=5e-3, rtol=5e-3)
    # K-tiled accumulator path (in_features > 1024 -> grid over K + f32 acc).
    run_case(keys[2], batch=24, input_size=1536, output_size=160,
             atol=5e-3, rtol=5e-3)

    print("KERNEL_OK")
</pallas_src>

<mosaic_0001>
module attributes {stable_mosaic.version = 11 : i64} {
  func.func @_linear_kernel(%arg0: i32, %arg1: i32, %arg2: memref<8x16xf32, #tpu.memory_space<vmem>>, %arg3: memref<16x128xf32, #tpu.memory_space<vmem>>, %arg4: memref<1x128xf32, #tpu.memory_space<vmem>>, %arg5: memref<8x128xf32, #tpu.memory_space<vmem>>) attributes {dimension_semantics = [#tpu.dimension_semantics<parallel>, #tpu.dimension_semantics<parallel>], iteration_bounds = array<i64: 1, 1>, scalar_prefetch = 0 : i64, scratch_operands = 0 : i64, tpu.core_type = #tpu.core_type<tc>, window_params = [{transform_indices = @transform_0, window_bounds = array<i64: 8, 16>}, {transform_indices = @transform_1, window_bounds = array<i64: 16, 128>}, {transform_indices = @transform_2, window_bounds = array<i64: 1, 128>}, {transform_indices = @transform_3, window_bounds = array<i64: 8, 128>}]} {
    %c0 = arith.constant 0 : index
    %c0_0 = arith.constant 0 : index
    %0 = vector.load %arg2[%c0, %c0_0] : memref<8x16xf32, #tpu.memory_space<vmem>>, vector<8x16xf32>
    %c0_1 = arith.constant 0 : index
    %c0_2 = arith.constant 0 : index
    %1 = vector.load %arg3[%c0_1, %c0_2] : memref<16x128xf32, #tpu.memory_space<vmem>>, vector<16x128xf32>
    %cst = arith.constant dense<0.000000e+00> : vector<8x128xf32>
    %2 = tpu.matmul %0, %1, %cst {dimension_numbers = #tpu.dot_dimension_numbers<[1], [0], [0], [1], [0, 0, 1, 1], [], []>} : vector<8x16xf32>, vector<16x128xf32>, vector<8x128xf32> -> vector<8x128xf32>
    %c0_3 = arith.constant 0 : index
    %c0_4 = arith.constant 0 : index
    %3 = vector.load %arg4[%c0_3, %c0_4] : memref<1x128xf32, #tpu.memory_space<vmem>>, vector<1x128xf32>
    %4 = vector.broadcast %3 : vector<1x128xf32> to vector<8x128xf32>
    %5 = arith.addf %2, %4 : vector<8x128xf32>
    %c0_5 = arith.constant 0 : index
    %c0_6 = arith.constant 0 : index
    %6 = vector.load %arg5[%c0_5, %c0_6] : memref<8x128xf32, #tpu.memory_space<vmem>>, vector<8x128xf32>
    tpu.vector_store %arg5[%c0_5, %c0_6], %5 {strides = array<i32>} : memref<8x128xf32, #tpu.memory_space<vmem>>, vector<8x128xf32>,
    return
  }
  func.func @transform_0(%arg0: i32, %arg1: i32) -> (i32, i32) {
    %c0_i32 = arith.constant 0 : i32
    %c0_i32_0 = arith.constant 0 : i32
    return %arg0, %c0_i32 : i32, i32
  }
  func.func @transform_1(%arg0: i32, %arg1: i32) -> (i32, i32) {
    %c0_i32 = arith.constant 0 : i32
    %c0_i32_0 = arith.constant 0 : i32
    return %c0_i32, %arg1 : i32, i32
  }
  func.func @transform_2(%arg0: i32, %arg1: i32) -> (i32, i32) {
    %c0_i32 = arith.constant 0 : i32
    %c0_i32_0 = arith.constant 0 : i32
    return %c0_i32, %arg1 : i32, i32
  }
  func.func @transform_3(%arg0: i32, %arg1: i32) -> (i32, i32) {
    %c0_i32 = arith.constant 0 : i32
    return %arg0, %arg1 : i32, i32
  }
}

</mosaic_0001>

<llo_original>
// kernel: tpu_custom_call.1
$region0: #{tpu_custom_call.1}
  #allocation0 [shape = 'u32[]', space=smem, size = 0x4, offset = 0x4, fixed_abs, tag = 'smem constant byte address 0x4 - core index']
  #allocation1 [shape = 'u32[72,128]{1,0:T(1,128)}', space=vmem, size = 0x9000, scoped, tag = 'internal scratch']
  %s0 = inlined_call_operand.hbm [shape: f32[8,16], index: 0, kind: input, shape index: {}]
  %s1 = inlined_call_operand.hbm [shape: f32[16,128], index: 1, kind: input, shape index: {}]
  %s2 = inlined_call_operand.vmem [shape: f32[1,128], index: 2, kind: input, shape index: {}]
  %s3 = inlined_call_operand.hbm [shape: f32[8,128], index: 3, kind: output, shape index: {}]
  %s4 = sld [smem:[#allocation0]]
  $region30: #{tpu_custom_call.1} parent=0
    _
  %s6 = ssub.s32 1, %s4
  %s7 = scalar_select 0, %s6, %s4
  $region1: #{tpu_custom_call.1} parent=0
    #allocation2 [shape = 'u8[4096]{0}', space=vmem, size = 0x1000, scoped, tag = 'input window, operand 0, single buffered']
    #allocation3 [shape = 's32[1]{0}', space=sflag, size = 0x4, scoped, tag = 'scoped memory for tpu_custom_call.1']
    #allocation4 [shape = 's32[1]{0}', space=sflag, size = 0x4, scoped, tag = 'scoped memory for tpu_custom_call.1']
    #allocation5 [shape = 'u8[8192]{0}', space=vmem, size = 0x2000, scoped, tag = 'input window, operand 1, single buffered']
    #allocation6 [shape = 's32[1]{0}', space=sflag, size = 0x4, scoped, tag = 'scoped memory for tpu_custom_call.1']
    #allocation7 [shape = 'u8[4096]{0}', space=vmem, size = 0x1000, scoped, tag = 'output window, operand 0, single buffered']
    %8 = vsyncpa [#allocation3], 0
    %9 = vsyncpa [#allocation6], 0
    %10 = vsyncpa [#allocation4], 0
    // Predicated region
    $region2: #{tpu_custom_call.1} parent=1 // pred_check
      _
    $region3: #{tpu_custom_call.1} parent=1 // pred_check_branch
      %12 = sbr.rel (0) target = $region5
    $region4: #{tpu_custom_call.1} parent=1 // pred_region
      %14 = vsyncadd [#allocation3], 0
      %s16 = sshll.u32 %s0, 4
      %s17 = int_to_ptr.hbm [resolvable:$true] %s16
      %s18 = sshll.u32 [#allocation2], 4
      %s19 = int_to_ptr.vmem [resolvable:$true] %s18
      %21 = dma.hbm_to_vmem [thread:$0]  %s17, 128, %s19, [#allocation3]
    $region5: #{tpu_custom_call.1} parent=1 // pred_fallthru
      _
    // Predicated region
    $region6: #{tpu_custom_call.1} parent=1 // pred_check
      _
    $region7: #{tpu_custom_call.1} parent=1 // pred_check_branch
      %23 = sbr.rel (0) target = $region9
    $region8: #{tpu_custom_call.1} parent=1 // pred_region
      %25 = vsyncadd [#allocation6], 0
      %s26 = sshll.u32 %s1, 4
      %s27 = int_to_ptr.hbm [resolvable:$true] %s26
      %s28 = sshll.u32 [#allocation5], 4
      %s29 = int_to_ptr.vmem [resolvable:$true] %s28
      %34 = dma.hbm_to_vmem [thread:$0]  %s27, 256, %s29, [#allocation6], 128, 128, 8
    $region9: #{tpu_custom_call.1} parent=1 // pred_fallthru
      _
    // Predicated region
    $region10: #{tpu_custom_call.1} parent=1 // pred_check
      _
    $region11: #{tpu_custom_call.1} parent=1 // pred_check_branch
      %36 = sbr.rel (0) target = $region13
    $region12: #{tpu_custom_call.1} parent=1 // pred_region
      _
    $region13: #{tpu_custom_call.1} parent=1 // pred_fallthru
      _
    // Predicated region
    $region14: #{tpu_custom_call.1} parent=1 // pred_check
      _
    $region15: #{tpu_custom_call.1} parent=1 // pred_check_branch
      %38 = sbr.rel (0) target = $region17
    $region16: #{tpu_custom_call.1} parent=1 // pred_region
      %40 = dma.done [#allocation3], 128
    $region17: #{tpu_custom_call.1} parent=1 // pred_fallthru
      _
    // Predicated region
    $region18: #{tpu_custom_call.1} parent=1 // pred_check
      _
    $region19: #{tpu_custom_call.1} parent=1 // pred_check_branch
      %42 = sbr.rel (0) target = $region21
    $region20: #{tpu_custom_call.1} parent=1 // pred_region
      %44 = dma.done [#allocation6], 256
    $region21: #{tpu_custom_call.1} parent=1 // pred_fallthru
      _
    %v45 = vld [vmem:[#allocation2] sm:$0xff]
    %v46 = vld [vmem:[#allocation5] sm:$0xff]
    %v47 = vld [vmem:[#allocation5 + $0x8] sm:$0xff]
    %v48 = vld [vmem:[%s2] sm:$0x1]
    %v50 = vperm.slane %v48, 0
    %vm52 = vcmask 130048
    %v54 = vsel %vm52, %v45, 0
    %56 = vmatpush.msra.mxu0 0.0
    %57 = vmatpush.msra.mxu0 0.0
    %58 = vmatpush.msra.mxu0 0.0
    %59 = vmatpush.msra.mxu0 0.0
    %60 = vmatpush.msra.mxu0 0.0
    %61 = vmatpush.msra.mxu0 0.0
    %62 = vmatpush.msra.mxu0 0.0
    %63 = vmatpush.msra.mxu0 0.0
    %64 = vmatpush.msra.mxu0 0.0
    %65 = vmatpush.msra.mxu0 0.0
    %66 = vmatpush.msra.mxu0 0.0
    %67 = vmatpush.msra.mxu0 0.0
    %68 = vmatpush.msra.mxu0 0.0
    %69 = vmatpush.msra.mxu0 0.0
    %70 = vmatpush.msra.mxu0 %v47
    %71 = vmatpush.msra.mxu0 %v46
    %72 = vmatmul.f32.gmra.mxu0 %v54
    %v73 = vpop.f32.mrf.mxu0
    %v74 = vadd.f32 %v50, %v73
    %75 = vdwg.mxu0
    %76 = vst [vmem:[#allocation7] sm:$0xff] %v74
    // Predicated region
    $region22: #{tpu_custom_call.1} parent=1 // pred_check
      _
    $region23: #{tpu_custom_call.1} parent=1 // pred_check_branch
      %78 = sbr.rel (0) target = $region25
    $region24: #{tpu_custom_call.1} parent=1 // pred_region
      %80 = vsyncadd [#allocation4], 0
      %s82 = sshll.u32 [#allocation7], 4
      %s83 = int_to_ptr.vmem [resolvable:$true] %s82
      %s84 = sshll.u32 %s3, 4
      %s85 = int_to_ptr.hbm [resolvable:$true] %s84
      %87 = dma.vmem_to_hbm [thread:$0]  %s83, 128, %s85, [#allocation4]
    $region25: #{tpu_custom_call.1} parent=1 // pred_fallthru
      _
    // Predicated region
    $region26: #{tpu_custom_call.1} parent=1 // pred_check
      _
    $region27: #{tpu_custom_call.1} parent=1 // pred_check_branch
      %89 = sbr.rel (0) target = $region29
    $region28: #{tpu_custom_call.1} parent=1 // pred_region
      %91 = dma.done [#allocation4], 128
    $region29: #{tpu_custom_call.1} parent=1 // pred_fallthru
      _
    %92 = vsyncpa [#allocation3], 1
    %93 = vsyncpa [#allocation6], 1
    %94 = vsyncpa [#allocation4], 1

</llo_original>
